<compile_context>
chip_gen: v6e
topology: v6e:2x2x1
jax: 0.10.0
libtpu: 0.0.40
codegen_flags: <defaults>
</compile_context>

<pallas_src>
import math

import jax
import jax.numpy as jnp
from jax import lax
from jax.experimental import pallas as pl
from jax.experimental.pallas import tpu as pltpu

_INV_SQRT2 = 1.0 / math.sqrt(2.0)


def _round_up(x, m):
    return ((x + m - 1) // m) * m


def _ffn_kernel(x_ref, w1_ref, b1_ref, w2_ref, b2_ref, o_ref, acc_ref):
    l = pl.program_id(1)

    # Linear 1: (tm, Hp) x-tile against (Hp, ti) weight slab, f32 accumulation.
    h = jnp.dot(x_ref[...], w1_ref[...], preferred_element_type=jnp.float32)
    h = h + b1_ref[...]                              # b1 fused into the h tile
    # Exact (erf-based) GELU in f32 — matches torch.nn.GELU() default.
    h = 0.5 * h * (1.0 + lax.erf(h * _INV_SQRT2))
    # Linear 2: partial contraction over this I-slab.
    partial = jnp.dot(h.astype(w2_ref.dtype), w2_ref[...],
                      preferred_element_type=jnp.float32)

    # First I-step writes directly (no zero-init pass); later steps accumulate.
    @pl.when(l == 0)
    def _first():
        acc_ref[...] = partial

    @pl.when(l > 0)
    def _accum():
        acc_ref[...] += partial

    @pl.when(l == pl.num_programs(1) - 1)
    def _finalize():
        # b2 added once per output tile at finalize (not per inner step).
        o_ref[...] = (acc_ref[...] + b2_ref[...]).astype(o_ref.dtype)


def _tpu_info():
    """(device_kind, physical VMEM bytes per core) with safe fallbacks."""
    kind = ""
    try:
        kind = str(getattr(jax.devices()[0], "device_kind", "")).lower()
    except Exception:
        pass
    vmem_cap = None
    try:
        vmem_cap = int(pltpu.get_tpu_info().vmem_capacity_bytes)
    except Exception:
        vmem_cap = None
    if not vmem_cap or vmem_cap <= 0:
        vmem_cap = (64 << 20) if ("v7" in kind or "7x" in kind) else (128 << 20)
    return kind, vmem_cap


def _vmem_footprint(tm, ti, hp, eb, out_eb):
    """Steady-state VMEM bytes for the chosen tiling (double-buffered specs)."""
    return (2 * tm * hp * eb                 # x tiles (compute dtype)
            + 2 * tm * hp * out_eb           # out tiles (x.dtype!)
            + 2 * (hp * ti + ti * hp) * eb   # W1 / W2 slabs
            + 2 * (ti + hp) * 4              # biases (f32)
            + tm * hp * 4)                   # f32 accumulator scratch


def pointwise_feed_forward(x, w1, b1, w2, b2, *, tm=None, ti=None,
                           compute_dtype=None):
    """x: (B, S, H). w1: (H, I), b1: (1, I) or (I,), w2: (I, H), b2: (1, H) or (H,).

    Returns (B, S, H) in x.dtype. MXU operands are bf16 by default for f32
    inputs; GELU and accumulation stay in f32.
    """
    B, S, H = x.shape
    I = w1.shape[1]
    M = B * S

    kind, vmem_cap = _tpu_info()
    is_v7 = ("v7" in kind) or ("7x" in kind)

    # Compute dtype: bf16 operands by default when inputs are f32.
    if compute_dtype is not None:
        cdt = jnp.dtype(compute_dtype)
    elif x.dtype == jnp.float32:
        cdt = jnp.dtype(jnp.bfloat16)
    else:
        cdt = jnp.dtype(x.dtype)
    eb = cdt.itemsize
    out_eb = jnp.dtype(x.dtype).itemsize

    # Generation-aware tile defaults.
    if tm is None:
        tm = 256 if is_v7 else 1024
    if ti is None:
        ti = 512 if is_v7 else 1024

    # Clamp to (padded) problem size, keep sublane/lane alignment.
    tm = max(8, min(tm, _round_up(M, 8)))
    ti = max(128, min(ti, _round_up(I, 128)))
    # v7x: make sure the "parallel" M axis has >= 2 tiles so both TCs get work.
    if is_v7 and M >= 16:
        tm = min(tm, _round_up((M + 1) // 2, 8))

    Hp = _round_up(H, 128)          # lane-dense output / full MXU tiles

    # Shrink tiles until the footprint fits comfortably in physical VMEM.
    budget = int(0.75 * vmem_cap)
    while (_vmem_footprint(tm, ti, Hp, eb, out_eb) > budget
           and (tm > 256 or ti > 256)):
        if tm >= ti and tm > 256:
            tm = max(256, _round_up(tm // 2, 8))
        else:
            ti = max(256, _round_up(ti // 2, 128))
    tm = max(8, min(tm, _round_up(M, 8)))
    ti = max(128, min(ti, _round_up(I, 128)))

    Mp = _round_up(M, tm)
    Ip = _round_up(I, ti)

    # Prepare (and zero-pad) operands. Zero padding keeps results exact.
    x2d = x.reshape(M, H).astype(cdt)
    w1c = w1.astype(cdt)
    w2c = w2.astype(cdt)
    b1c = jnp.asarray(b1, jnp.float32).reshape(1, I)
    b2c = jnp.asarray(b2, jnp.float32).reshape(1, H)
    if (Mp, Hp) != (M, H):
        x2d = jnp.pad(x2d, ((0, Mp - M), (0, Hp - H)))
    if (Hp, Ip) != (H, I):
        w1c = jnp.pad(w1c, ((0, Hp - H), (0, Ip - I)))
    if Ip != I:
        b1c = jnp.pad(b1c, ((0, 0), (0, Ip - I)))
    if (Ip, Hp) != (I, H):
        w2c = jnp.pad(w2c, ((0, Ip - I), (0, Hp - H)))
    if Hp != H:
        b2c = jnp.pad(b2c, ((0, 0), (0, Hp - H)))

    # VMEM limit: real footprint + headroom, capped at 85% of physical VMEM.
    est = _vmem_footprint(tm, ti, Hp, eb, out_eb)
    vmem_limit = int(min(0.85 * vmem_cap,
                         max(est * 1.2 + (4 << 20), 32 << 20)))

    grid = (Mp // tm, Ip // ti)     # M tiles (parallel), I tiles (reduction, last)

    out2d = pl.pallas_call(
        _ffn_kernel,
        out_shape=jax.ShapeDtypeStruct((Mp, Hp), x.dtype),
        grid_spec=pltpu.PrefetchScalarGridSpec(
            num_scalar_prefetch=0,
            grid=grid,
            in_specs=[
                pl.BlockSpec((tm, Hp), lambda i, l: (i, 0)),   # x tile
                pl.BlockSpec((Hp, ti), lambda i, l: (0, l)),   # W1 slab
                pl.BlockSpec((1, ti), lambda i, l: (0, l)),    # b1 slab
                pl.BlockSpec((ti, Hp), lambda i, l: (l, 0)),   # W2 slab
                pl.BlockSpec((1, Hp), lambda i, l: (0, 0)),    # b2 (resident)
            ],
            out_specs=pl.BlockSpec((tm, Hp), lambda i, l: (i, 0)),
            scratch_shapes=[pltpu.VMEM((tm, Hp), jnp.float32)],
        ),
        compiler_params=pltpu.CompilerParams(
            dimension_semantics=("parallel", "arbitrary"),
            vmem_limit_bytes=vmem_limit,
        ),
    )(x2d, w1c, b1c, w2c, b2c)

    return out2d[:M, :H].reshape(B, S, H)


def init_params(key, hidden_size, intermediate_size):
    """Deterministic init matching nn.Linear's U(-1/sqrt(fan_in), 1/sqrt(fan_in))."""
    k1, k2, k3, k4 = jax.random.split(key, 4)
    bound1 = 1.0 / math.sqrt(hidden_size)
    bound2 = 1.0 / math.sqrt(intermediate_size)
    w1 = jax.random.uniform(k1, (hidden_size, intermediate_size),
                            jnp.float32, -bound1, bound1)
    b1 = jax.random.uniform(k2, (1, intermediate_size),
                            jnp.float32, -bound1, bound1)
    w2 = jax.random.uniform(k3, (intermediate_size, hidden_size),
                            jnp.float32, -bound2, bound2)
    b2 = jax.random.uniform(k4, (1, hidden_size),
                            jnp.float32, -bound2, bound2)
    return w1, b1, w2, b2


if __name__ == "__main__":
    B, S, H, I = 2, 8, 32, 64
    key = jax.random.PRNGKey(0)
    kx, kp = jax.random.split(key)
    x = jax.random.normal(kx, (B, S, H), jnp.float32)
    w1, b1, w2, b2 = init_params(kp, H, I)

    # Reference in plain JAX (dropout is identity in eval mode).
    h_ref = x.reshape(-1, H) @ w1 + b1
    h_ref = 0.5 * h_ref * (1.0 + lax.erf(h_ref * _INV_SQRT2))
    y_ref = (h_ref @ w2 + b2).reshape(B, S, H)

    # Exact f32 compute path: tight parity with the torch reference.
    out_f32 = pointwise_feed_forward(x, w1, b1, w2, b2,
                                     compute_dtype=jnp.float32)
    out_f32 = jax.block_until_ready(out_f32)
    assert out_f32.shape == (B, S, H)
    assert jnp.allclose(out_f32, y_ref, atol=1e-5, rtol=1e-5)

    # Default fast path: bf16 MXU operands, f32 GELU/accumulation.
    out = jax.block_until_ready(pointwise_feed_forward(x, w1, b1, w2, b2))
    assert out.shape == (B, S, H)
    assert jnp.allclose(out, y_ref, atol=5e-2, rtol=5e-2)

    print("KERNEL_OK")
</pallas_src>

<mosaic_0001>
module attributes {stable_mosaic.version = 11 : i64} {
  func.func @_ffn_kernel(%arg0: i32, %arg1: i32, %arg2: memref<16x128xf32, #tpu.memory_space<vmem>>, %arg3: memref<128x128xf32, #tpu.memory_space<vmem>>, %arg4: memref<1x128xf32, #tpu.memory_space<vmem>>, %arg5: memref<128x128xf32, #tpu.memory_space<vmem>>, %arg6: memref<1x128xf32, #tpu.memory_space<vmem>>, %arg7: memref<16x128xf32, #tpu.memory_space<vmem>>, %arg8: memref<16x128xf32, #tpu.memory_space<vmem>>) attributes {dimension_semantics = [#tpu.dimension_semantics<parallel>, #tpu.dimension_semantics<arbitrary>], iteration_bounds = array<i64: 1, 1>, scalar_prefetch = 0 : i64, scratch_operands = 1 : i64, tpu.core_type = #tpu.core_type<tc>, window_params = [{transform_indices = @transform_0, window_bounds = array<i64: 16, 128>}, {transform_indices = @transform_1, window_bounds = array<i64: 128, 128>}, {transform_indices = @transform_2, window_bounds = array<i64: 1, 128>}, {transform_indices = @transform_3, window_bounds = array<i64: 128, 128>}, {pipeline_mode = #tpu.pipeline_mode<synchronous>, transform_indices = @transform_4, window_bounds = array<i64: 1, 128>}, {transform_indices = @transform_5, window_bounds = array<i64: 16, 128>}]} {
    %c0 = arith.constant 0 : index
    %c0_0 = arith.constant 0 : index
    %0 = vector.load %arg2[%c0, %c0_0] : memref<16x128xf32, #tpu.memory_space<vmem>>, vector<16x128xf32>
    %c0_1 = arith.constant 0 : index
    %c0_2 = arith.constant 0 : index
    %1 = vector.load %arg3[%c0_1, %c0_2] : memref<128x128xf32, #tpu.memory_space<vmem>>, vector<128x128xf32>
    %cst = arith.constant dense<0.000000e+00> : vector<16x128xf32>
    %2 = tpu.matmul %0, %1, %cst {dimension_numbers = #tpu.dot_dimension_numbers<[1], [0], [0], [1], [0, 0, 1, 1], [], []>} : vector<16x128xf32>, vector<128x128xf32>, vector<16x128xf32> -> vector<16x128xf32>
    %c0_3 = arith.constant 0 : index
    %c0_4 = arith.constant 0 : index
    %3 = vector.load %arg4[%c0_3, %c0_4] : memref<1x128xf32, #tpu.memory_space<vmem>>, vector<1x128xf32>
    %4 = vector.broadcast %3 : vector<1x128xf32> to vector<16x128xf32>
    %5 = arith.addf %2, %4 : vector<16x128xf32>
    %cst_5 = arith.constant 5.000000e-01 : f32
    %6 = vector.broadcast %cst_5 : f32 to vector<16x128xf32>
    %7 = arith.mulf %6, %5 : vector<16x128xf32>
    %cst_6 = arith.constant 0.707106769 : f32
    %8 = vector.broadcast %cst_6 : f32 to vector<16x128xf32>
    %9 = arith.mulf %5, %8 : vector<16x128xf32>
    %10 = math.erf %9 : vector<16x128xf32>
    %cst_7 = arith.constant 1.000000e+00 : f32
    %11 = vector.broadcast %cst_7 : f32 to vector<16x128xf32>
    %12 = arith.addf %11, %10 : vector<16x128xf32>
    %13 = arith.mulf %7, %12 : vector<16x128xf32>
    %c0_8 = arith.constant 0 : index
    %c0_9 = arith.constant 0 : index
    %14 = vector.load %arg5[%c0_8, %c0_9] : memref<128x128xf32, #tpu.memory_space<vmem>>, vector<128x128xf32>
    %cst_10 = arith.constant dense<0.000000e+00> : vector<16x128xf32>
    %15 = tpu.matmul %13, %14, %cst_10 {dimension_numbers = #tpu.dot_dimension_numbers<[1], [0], [0], [1], [0, 0, 1, 1], [], []>} : vector<16x128xf32>, vector<128x128xf32>, vector<16x128xf32> -> vector<16x128xf32>
    %c0_i32 = arith.constant 0 : i32
    %16 = arith.cmpi eq, %arg1, %c0_i32 : i32
    %17 = arith.extui %16 : i1 to i32
    %c0_i32_11 = arith.constant 0 : i32
    %18 = arith.cmpi ne, %17, %c0_i32_11 : i32
    scf.if %18 {
      %c0_16 = arith.constant 0 : index
      %c0_17 = arith.constant 0 : index
      %25 = vector.load %arg8[%c0_16, %c0_17] : memref<16x128xf32, #tpu.memory_space<vmem>>, vector<16x128xf32>
      tpu.vector_store %arg8[%c0_16, %c0_17], %15 {strides = array<i32>} : memref<16x128xf32, #tpu.memory_space<vmem>>, vector<16x128xf32>,
    } else {
    }
    %c0_i32_12 = arith.constant 0 : i32
    %19 = arith.cmpi sgt, %arg1, %c0_i32_12 : i32
    %20 = arith.extui %19 : i1 to i32
    %c0_i32_13 = arith.constant 0 : i32
    %21 = arith.cmpi ne, %20, %c0_i32_13 : i32
    scf.if %21 {
      %c0_16 = arith.constant 0 : index
      %c0_17 = arith.constant 0 : index
      %25 = vector.load %arg8[%c0_16, %c0_17] : memref<16x128xf32, #tpu.memory_space<vmem>>, vector<16x128xf32>
      %26 = arith.addf %25, %15 : vector<16x128xf32>
      %c0_18 = arith.constant 0 : index
      %c0_19 = arith.constant 0 : index
      %27 = vector.load %arg8[%c0_18, %c0_19] : memref<16x128xf32, #tpu.memory_space<vmem>>, vector<16x128xf32>
      tpu.vector_store %arg8[%c0_18, %c0_19], %26 {strides = array<i32>} : memref<16x128xf32, #tpu.memory_space<vmem>>, vector<16x128xf32>,
    } else {
    }
    %c0_i32_14 = arith.constant 0 : i32
    %22 = arith.cmpi eq, %arg1, %c0_i32_14 : i32
    %23 = arith.extui %22 : i1 to i32
    %c0_i32_15 = arith.constant 0 : i32
    %24 = arith.cmpi ne, %23, %c0_i32_15 : i32
    scf.if %24 {
      %c0_16 = arith.constant 0 : index
      %c0_17 = arith.constant 0 : index
      %25 = vector.load %arg8[%c0_16, %c0_17] : memref<16x128xf32, #tpu.memory_space<vmem>>, vector<16x128xf32>
      %c0_18 = arith.constant 0 : index
      %c0_19 = arith.constant 0 : index
      %26 = vector.load %arg6[%c0_18, %c0_19] : memref<1x128xf32, #tpu.memory_space<vmem>>, vector<1x128xf32>
      %27 = vector.broadcast %26 : vector<1x128xf32> to vector<16x128xf32>
      %28 = arith.addf %25, %27 : vector<16x128xf32>
      %c0_20 = arith.constant 0 : index
      %c0_21 = arith.constant 0 : index
      %29 = vector.load %arg7[%c0_20, %c0_21] : memref<16x128xf32, #tpu.memory_space<vmem>>, vector<16x128xf32>
      tpu.vector_store %arg7[%c0_20, %c0_21], %28 {strides = array<i32>} : memref<16x128xf32, #tpu.memory_space<vmem>>, vector<16x128xf32>,
    } else {
    }
    return
  }
  func.func @transform_0(%arg0: i32, %arg1: i32) -> (i32, i32) {
    %c0_i32 = arith.constant 0 : i32
    %c0_i32_0 = arith.constant 0 : i32
    return %arg0, %c0_i32 : i32, i32
  }
  func.func @transform_1(%arg0: i32, %arg1: i32) -> (i32, i32) {
    %c0_i32 = arith.constant 0 : i32
    %c0_i32_0 = arith.constant 0 : i32
    return %c0_i32, %arg1 : i32, i32
  }
  func.func @transform_2(%arg0: i32, %arg1: i32) -> (i32, i32) {
    %c0_i32 = arith.constant 0 : i32
    %c0_i32_0 = arith.constant 0 : i32
    return %c0_i32, %arg1 : i32, i32
  }
  func.func @transform_3(%arg0: i32, %arg1: i32) -> (i32, i32) {
    %c0_i32 = arith.constant 0 : i32
    %c0_i32_0 = arith.constant 0 : i32
    return %arg1, %c0_i32 : i32, i32
  }
  func.func @transform_4(%arg0: i32, %arg1: i32) -> (i32, i32) {
    %c0_i32 = arith.constant 0 : i32
    %c0_i32_0 = arith.constant 0 : i32
    %c0_i32_1 = arith.constant 0 : i32
    return %c0_i32, %c0_i32_0 : i32, i32
  }
  func.func @transform_5(%arg0: i32, %arg1: i32) -> (i32, i32) {
    %c0_i32 = arith.constant 0 : i32
    %c0_i32_0 = arith.constant 0 : i32
    return %arg0, %c0_i32 : i32, i32
  }
}

</mosaic_0001>

<llo_original>
// kernel: tpu_custom_call.1
$region0: #{tpu_custom_call.1}
  #allocation0 [shape = 'u32[]', space=smem, size = 0x4, offset = 0x4, fixed_abs, tag = 'smem constant byte address 0x4 - core index']
  #allocation1 [shape = 'u32[144,128]{1,0:T(1,128)}', space=vmem, size = 0x12000, scoped, tag = 'internal scratch']
  #allocation2 [shape = 'f32[16,128]{1,0:T(8,128)}', space=vmem, size = 0x2000, scoped, tag = 'scratch operand']
  %s0 = inlined_call_operand.hbm [shape: f32[16,128], index: 0, kind: input, shape index: {}]
  %s1 = inlined_call_operand.hbm [shape: f32[128,128], index: 1, kind: input, shape index: {}]
  %s2 = inlined_call_operand.vmem [shape: f32[1,128], index: 2, kind: input, shape index: {}]
  %s3 = inlined_call_operand.hbm [shape: f32[128,128], index: 3, kind: input, shape index: {}]
  %s4 = inlined_call_operand.vmem [shape: f32[1,128], index: 4, kind: input, shape index: {}]
  %s5 = inlined_call_operand.hbm [shape: f32[16,128], index: 5, kind: output, shape index: {}]
  %s6 = sld [smem:[#allocation0]]
  $region54: #{tpu_custom_call.1} parent=0
    _
  %s8 = ssub.s32 1, %s6
  %s9 = scalar_select 0, %s8, %s6
  $region1: #{tpu_custom_call.1} parent=0
    #allocation3 [shape = 'u8[8192]{0}', space=vmem, size = 0x2000, scoped, tag = 'input window, operand 0, single buffered']
    #allocation4 [shape = 's32[1]{0}', space=sflag, size = 0x4, scoped, tag = 'scoped memory for tpu_custom_call.1']
    #allocation5 [shape = 's32[1]{0}', space=sflag, size = 0x4, scoped, tag = 'scoped memory for tpu_custom_call.1']
    #allocation6 [shape = 'u8[65536]{0}', space=vmem, size = 0x10000, scoped, tag = 'input window, operand 1, single buffered']
    #allocation7 [shape = 's32[1]{0}', space=sflag, size = 0x4, scoped, tag = 'scoped memory for tpu_custom_call.1']
    #allocation8 [shape = 'u8[65536]{0}', space=vmem, size = 0x10000, scoped, tag = 'input window, operand 3, single buffered']
    #allocation9 [shape = 'u8[8192]{0}', space=vmem, size = 0x2000, scoped, tag = 'output window, operand 0, single buffered']
    %10 = vsyncpa [#allocation4], 0
    %11 = vsyncpa [#allocation7], 0
    %12 = vsyncpa [#allocation5], 0
    // Predicated region
    $region2: #{tpu_custom_call.1} parent=1 // pred_check
      _
    $region3: #{tpu_custom_call.1} parent=1 // pred_check_branch
      %14 = sbr.rel (0) target = $region5
    $region4: #{tpu_custom_call.1} parent=1 // pred_region
      %s16 = ssub.s32 256, 256
      %17 = vsyncadd [#allocation4], %s16
      %s18 = sshll.u32 [#allocation3], 4
      %s19 = int_to_ptr.vmem [resolvable:$true] %s18
      %24 = dma.hbm_to_vmem [thread:$0]  %s0, 256, %s19, [#allocation4], 128, 128, 8
    $region5: #{tpu_custom_call.1} parent=1 // pred_fallthru
      _
    // Predicated region
    $region6: #{tpu_custom_call.1} parent=1 // pred_check
      _
    $region7: #{tpu_custom_call.1} parent=1 // pred_check_branch
      %26 = sbr.rel (0) target = $region9
    $region8: #{tpu_custom_call.1} parent=1 // pred_region
      %s28 = ssub.s32 2048, 2048
      %29 = vsyncadd [#allocation7], %s28
      %s30 = sshll.u32 [#allocation6], 4
      %s31 = int_to_ptr.vmem [resolvable:$true] %s30
      %36 = dma.hbm_to_vmem [thread:$0]  %s1, 2048, %s31, [#allocation7], 128, 128, 8
    $region9: #{tpu_custom_call.1} parent=1 // pred_fallthru
      _
    // Predicated region
    $region10: #{tpu_custom_call.1} parent=1 // pred_check
      _
    $region11: #{tpu_custom_call.1} parent=1 // pred_check_branch
      %38 = sbr.rel (0) target = $region13
    $region12: #{tpu_custom_call.1} parent=1 // pred_region
      _
    $region13: #{tpu_custom_call.1} parent=1 // pred_fallthru
      _
    // Predicated region
    $region14: #{tpu_custom_call.1} parent=1 // pred_check
      _
    $region15: #{tpu_custom_call.1} parent=1 // pred_check_branch
      %40 = sbr.rel (0) target = $region17
    $region16: #{tpu_custom_call.1} parent=1 // pred_region
      %s42 = ssub.s32 2048, 2048
      %43 = vsyncadd [#allocation7], %s42
      %s44 = sshll.u32 [#allocation8], 4
      %s45 = int_to_ptr.vmem [resolvable:$true] %s44
      %50 = dma.hbm_to_vmem [thread:$0]  %s3, 2048, %s45, [#allocation7], 128, 128, 8
    $region17: #{tpu_custom_call.1} parent=1 // pred_fallthru
      _
    // Predicated region
    $region18: #{tpu_custom_call.1} parent=1 // pred_check
      _
    $region19: #{tpu_custom_call.1} parent=1 // pred_check_branch
      %52 = sbr.rel (0) target = $region21
    $region20: #{tpu_custom_call.1} parent=1 // pred_region
      _
    $region21: #{tpu_custom_call.1} parent=1 // pred_fallthru
      _
    // Predicated region
    $region22: #{tpu_custom_call.1} parent=1 // pred_check
      _
    $region23: #{tpu_custom_call.1} parent=1 // pred_check_branch
      %54 = sbr.rel (0) target = $region25
    $region24: #{tpu_custom_call.1} parent=1 // pred_region
      %55 = dma.done [#allocation4], 256
    $region25: #{tpu_custom_call.1} parent=1 // pred_fallthru
      _
    // Predicated region
    $region26: #{tpu_custom_call.1} parent=1 // pred_check
      _
    $region27: #{tpu_custom_call.1} parent=1 // pred_check_branch
      %57 = sbr.rel (0) target = $region29
    $region28: #{tpu_custom_call.1} parent=1 // pred_region
      %58 = dma.done [#allocation7], 2048
    $region29: #{tpu_custom_call.1} parent=1 // pred_fallthru
      _
    // Predicated region
    $region30: #{tpu_custom_call.1} parent=1 // pred_check
      _
    $region31: #{tpu_custom_call.1} parent=1 // pred_check_branch
      %60 = sbr.rel (0) target = $region33
    $region32: #{tpu_custom_call.1} parent=1 // pred_region
      %61 = dma.done [#allocation7], 2048
    $region33: #{tpu_custom_call.1} parent=1 // pred_fallthru
      _
    %v62 = vld [vmem:[#allocation3] sm:$0xff]
    %v63 = vld [vmem:[#allocation3 + $0x8] sm:$0xff]
    %v64 = vld [vmem:[#allocation6] sm:$0xff]
    %v65 = vld [vmem:[#allocation6 + $0x8] sm:$0xff]
    %v66 = vld [vmem:[#allocation6 + $0x10] sm:$0xff]
    %v67 = vld [vmem:[#allocation6 + $0x18] sm:$0xff]
    %v68 = vld [vmem:[#allocation6 + $0x20] sm:$0xff]
    %v69 = vld [vmem:[#allocation6 + $0x28] sm:$0xff]
    %v70 = vld [vmem:[#allocation6 + $0x30] sm:$0xff]
    %v71 = vld [vmem:[#allocation6 + $0x38] sm:$0xff]
    %v72 = vld [vmem:[#allocation6 + $0x40] sm:$0xff]
    %v73 = vld [vmem:[#allocation6 + $0x48] sm:$0xff]
    %v74 = vld [vmem:[#allocation6 + $0x50] sm:$0xff]
    %v75 = vld [vmem:[#allocation6 + $0x58] sm:$0xff]
    %v76 = vld [vmem:[#allocation6 + $0x60] sm:$0xff]
    %v77 = vld [vmem:[#allocation6 + $0x68] sm:$0xff]
    %v78 = vld [vmem:[#allocation6 + $0x70] sm:$0xff]
    %v79 = vld [vmem:[#allocation6 + $0x78] sm:$0xff]
    %v80 = vld [vmem:[%s2] sm:$0x1]
    %v82 = vlaneseq
    %v83 = vshrl.u32 %v82, 7
    %v84 = vsub.s32 0, %v83
    %v85 = vrot.slane %v80, %v84
    %87 = vmatprep.subr.mxu0 0.0
    %88 = vmatpush1.msra.mxu0 %v79
    %89 = vmatprep.subr.mxu0 0.0
    %90 = vmatpush1.msra.mxu0 %v78
    %91 = vmatprep.subr.mxu0 0.0
    %92 = vmatpush1.msra.mxu0 %v77
    %93 = vmatprep.subr.mxu0 0.0
    %94 = vmatpush1.msra.mxu0 %v76
    %95 = vmatprep.subr.mxu0 0.0
    %96 = vmatpush1.msra.mxu0 %v75
    %97 = vmatprep.subr.mxu0 0.0
    %98 = vmatpush1.msra.mxu0 %v74
    %99 = vmatprep.subr.mxu0 0.0
    %100 = vmatpush1.msra.mxu0 %v73
    %101 = vmatprep.subr.mxu0 0.0
    %102 = vmatpush1.msra.mxu0 %v72
    %103 = vmatprep.subr.mxu0 0.0
    %104 = vmatpush1.msra.mxu0 %v71
    %105 = vmatprep.subr.mxu0 0.0
    %106 = vmatpush1.msra.mxu0 %v70
    %107 = vmatprep.subr.mxu0 0.0
    %108 = vmatpush1.msra.mxu0 %v69
    %109 = vmatprep.subr.mxu0 0.0
    %110 = vmatpush1.msra.mxu0 %v68
    %111 = vmatprep.subr.mxu0 0.0
    %112 = vmatpush1.msra.mxu0 %v67
    %113 = vmatprep.subr.mxu0 0.0
    %114 = vmatpush1.msra.mxu0 %v66
    %115 = vmatprep.subr.mxu0 0.0
    %116 = vmatpush1.msra.mxu0 %v65
    %117 = vmatprep.subr.mxu0 0.0
    %118 = vmatpush1.msra.mxu0 %v64
    %119 = vmatprep.subr.mxu0 0.0
    %120 = vmatpush2.msra.mxu0 0.0
    %121 = vmatprep.subr.mxu0 0.0
    %122 = vmatpush2.msra.mxu0 0.0
    %123 = vmatprep.subr.mxu0 0.0
    %124 = vmatpush2.msra.mxu0 0.0
    %125 = vmatprep.subr.mxu0 0.0
    %126 = vmatpush2.msra.mxu0 0.0
    %127 = vmatprep.subr.mxu0 0.0
    %128 = vmatpush2.msra.mxu0 0.0
    %129 = vmatprep.subr.mxu0 0.0
    %130 = vmatpush2.msra.mxu0 0.0
    %131 = vmatprep.subr.mxu0 0.0
    %132 = vmatpush2.msra.mxu0 0.0
    %133 = vmatprep.subr.mxu0 0.0
    %134 = vmatpush2.msra.mxu0 0.0
    %135 = vmatprep.subr.mxu0 0.0
    %136 = vmatpush2.msra.mxu0 0.0
    %137 = vmatprep.subr.mxu0 0.0
    %138 = vmatpush2.msra.mxu0 0.0
    %139 = vmatprep.subr.mxu0 0.0
    %140 = vmatpush2.msra.mxu0 0.0
    %141 = vmatprep.subr.mxu0 0.0
    %142 = vmatpush2.msra.mxu0 0.0
    %143 = vmatprep.subr.mxu0 0.0
    %144 = vmatpush2.msra.mxu0 0.0
    %145 = vmatprep.subr.mxu0 0.0
    %146 = vmatpush2.msra.mxu0 0.0
    %147 = vmatprep.subr.mxu0 0.0
    %148 = vmatpush2.msra.mxu0 0.0
    %149 = vmatprep.subr.mxu0 0.0
    %150 = vmatpush2.msra.mxu0 0.0
    %151 = vmatprep.mubr.f32.mxu0 0.0
    %152 = vmatmul.mubr.f32.gmra.mxu0 %v62
    %v153 = vpop.f32.mrf.mxu0
    %v154 = vadd.f32 %v85, %v153
    %v155 = vpop.f32.mrf.mxu0
    %156 = vmatprep.mubr.f32.mxu0 0.0
    %157 = vmatmul.mubr.f32.gmra.mxu0 %v63
    %v158 = vpop.f32.mrf.mxu0
    %v159 = vadd.f32 %v85, %v158
    %v160 = vpop.f32.mrf.mxu0
    %161 = vdwg.mxu0
    %v162 = vmul.f32 %v154, 0.5
    %v163 = vmul.f32 %v159, 0.5
    %v164 = vmul.f32 %v154, 0.70710677
    %v165 = vmul.f32 %v159, 0.70710677
    %v166 = verf.f32.pop %v164
    %v167 = verf.f32.pop %v165
    %v168 = vadd.f32 %v166, 1.0
    %v169 = vadd.f32 %v167, 1.0
    %v170 = vmul.f32 %v162, %v168
    %v171 = vmul.f32 %v163, %v169
    %v172 = vld [vmem:[#allocation8] sm:$0xff]
    %v173 = vld [vmem:[#allocation8 + $0x8] sm:$0xff]
    %v174 = vld [vmem:[#allocation8 + $0x10] sm:$0xff]
    %v175 = vld [vmem:[#allocation8 + $0x18] sm:$0xff]
    %v176 = vld [vmem:[#allocation8 + $0x20] sm:$0xff]
    %v177 = vld [vmem:[#allocation8 + $0x28] sm:$0xff]
    %v178 = vld [vmem:[#allocation8 + $0x30] sm:$0xff]
    %v179 = vld [vmem:[#allocation8 + $0x38] sm:$0xff]
    %v180 = vld [vmem:[#allocation8 + $0x40] sm:$0xff]
    %v181 = vld [vmem:[#allocation8 + $0x48] sm:$0xff]
    %v182 = vld [vmem:[#allocation8 + $0x50] sm:$0xff]
    %v183 = vld [vmem:[#allocation8 + $0x58] sm:$0xff]
    %v184 = vld [vmem:[#allocation8 + $0x60] sm:$0xff]
    %v185 = vld [vmem:[#allocation8 + $0x68] sm:$0xff]
    %v186 = vld [vmem:[#allocation8 + $0x70] sm:$0xff]
    %v187 = vld [vmem:[#allocation8 + $0x78] sm:$0xff]
    %188 = vmatprep.subr.mxu0 0.0
    %189 = vmatpush1.msra.mxu0 %v187
    %190 = vmatprep.subr.mxu0 0.0
    %191 = vmatpush1.msra.mxu0 %v186
    %192 = vmatprep.subr.mxu0 0.0
    %193 = vmatpush1.msra.mxu0 %v185
    %194 = vmatprep.subr.mxu0 0.0
    %195 = vmatpush1.msra.mxu0 %v184
    %196 = vmatprep.subr.mxu0 0.0
    %197 = vmatpush1.msra.mxu0 %v183
    %198 = vmatprep.subr.mxu0 0.0
    %199 = vmatpush1.msra.mxu0 %v182
    %200 = vmatprep.subr.mxu0 0.0
    %201 = vmatpush1.msra.mxu0 %v181
    %202 = vmatprep.subr.mxu0 0.0
    %203 = vmatpush1.msra.mxu0 %v180
    %204 = vmatprep.subr.mxu0 0.0
    %205 = vmatpush1.msra.mxu0 %v179
    %206 = vmatprep.subr.mxu0 0.0
    %207 = vmatpush1.msra.mxu0 %v178
    %208 = vmatprep.subr.mxu0 0.0
    %209 = vmatpush1.msra.mxu0 %v177
    %210 = vmatprep.subr.mxu0 0.0
    %211 = vmatpush1.msra.mxu0 %v176
    %212 = vmatprep.subr.mxu0 0.0
    %213 = vmatpush1.msra.mxu0 %v175
    %214 = vmatprep.subr.mxu0 0.0
    %215 = vmatpush1.msra.mxu0 %v174
    %216 = vmatprep.subr.mxu0 0.0
    %217 = vmatpush1.msra.mxu0 %v173
    %218 = vmatprep.subr.mxu0 0.0
    %219 = vmatpush1.msra.mxu0 %v172
    %220 = vmatprep.subr.mxu0 0.0
    %221 = vmatpush2.msra.mxu0 0.0
    %222 = vmatprep.subr.mxu0 0.0
    %223 = vmatpush2.msra.mxu0 0.0
    %224 = vmatprep.subr.mxu0 0.0
    %225 = vmatpush2.msra.mxu0 0.0
    %226 = vmatprep.subr.mxu0 0.0
    %227 = vmatpush2.msra.mxu0 0.0
    %228 = vmatprep.subr.mxu0 0.0
    %229 = vmatpush2.msra.mxu0 0.0
    %230 = vmatprep.subr.mxu0 0.0
    %231 = vmatpush2.msra.mxu0 0.0
    %232 = vmatprep.subr.mxu0 0.0
    %233 = vmatpush2.msra.mxu0 0.0
    %234 = vmatprep.subr.mxu0 0.0
    %235 = vmatpush2.msra.mxu0 0.0
    %236 = vmatprep.subr.mxu0 0.0
    %237 = vmatpush2.msra.mxu0 0.0
    %238 = vmatprep.subr.mxu0 0.0
    %239 = vmatpush2.msra.mxu0 0.0
    %240 = vmatprep.subr.mxu0 0.0
    %241 = vmatpush2.msra.mxu0 0.0
    %242 = vmatprep.subr.mxu0 0.0
    %243 = vmatpush2.msra.mxu0 0.0
    %244 = vmatprep.subr.mxu0 0.0
    %245 = vmatpush2.msra.mxu0 0.0
    %246 = vmatprep.subr.mxu0 0.0
    %247 = vmatpush2.msra.mxu0 0.0
    %248 = vmatprep.subr.mxu0 0.0
    %249 = vmatpush2.msra.mxu0 0.0
    %250 = vmatprep.subr.mxu0 0.0
    %251 = vmatpush2.msra.mxu0 0.0
    %252 = vmatprep.mubr.f32.mxu0 0.0
    %253 = vmatmul.mubr.f32.gmra.mxu0 %v170
    %v254 = vpop.f32.mrf.mxu0
    %v255 = vadd.f32 0.0, %v254
    %v256 = vpop.f32.mrf.mxu0
    %257 = vmatprep.mubr.f32.mxu0 0.0
    %258 = vmatmul.mubr.f32.gmra.mxu0 %v171
    %v259 = vpop.f32.mrf.mxu0
    %v260 = vadd.f32 0.0, %v259
    %v261 = vpop.f32.mrf.mxu0
    %262 = vdwg.mxu0
    %p263 = scmp.eq.s32.totalorder 0, 0
    // Predicated region
    $region34: #{tpu_custom_call.1} parent=1 // pred_check
      %p264 = pneg %p263
    $region35: #{tpu_custom_call.1} parent=1 // pred_check_branch
      %266 = sbr.rel (%p264) target = $region37
    $region36: #{tpu_custom_call.1} parent=1 // pred_region
      %267 = vst [vmem:[#allocation2] sm:$0xff] %v255
      %268 = vst [vmem:[#allocation2 + $0x8] sm:$0xff] %v260
    $region37: #{tpu_custom_call.1} parent=1 // pred_fallthru
      _
    %p269 = scmp.gt.s32.totalorder 0, 0
    // Predicated region
    $region38: #{tpu_custom_call.1} parent=1 // pred_check
      %p270 = pneg %p269
    $region39: #{tpu_custom_call.1} parent=1 // pred_check_branch
      %272 = sbr.rel (%p270) target = $region41
    $region40: #{tpu_custom_call.1} parent=1 // pred_region
      %v273 = vld [vmem:[#allocation2] sm:$0xff]
      %v274 = vld [vmem:[#allocation2 + $0x8] sm:$0xff]
      %v275 = vadd.f32 %v273, %v255
      %v276 = vadd.f32 %v274, %v260
      %277 = vst [vmem:[#allocation2] sm:$0xff] %v275
      %278 = vst [vmem:[#allocation2 + $0x8] sm:$0xff] %v276
    $region41: #{tpu_custom_call.1} parent=1 // pred_fallthru
      _
    // Predicated region
    $region42: #{tpu_custom_call.1} parent=1 // pred_check
      %p279 = pneg %p263
    $region43: #{tpu_custom_call.1} parent=1 // pred_check_branch
      %281 = sbr.rel (%p279) target = $region45
    $region44: #{tpu_custom_call.1} parent=1 // pred_region
      %v282 = vld [vmem:[#allocation2] sm:$0xff]
      %v283 = vld [vmem:[#allocation2 + $0x8] sm:$0xff]
      %v284 = vld [vmem:[%s4] sm:$0x1]
      %v286 = vlaneseq
      %v287 = vshrl.u32 %v286, 7
      %v288 = vsub.s32 0, %v287
      %v289 = vrot.slane %v284, %v288
      %v291 = vadd.f32 %v282, %v289
      %v292 = vadd.f32 %v283, %v289
      %293 = vst [vmem:[#allocation9] sm:$0xff] %v291
      %294 = vst [vmem:[#allocation9 + $0x8] sm:$0xff] %v292
    $region45: #{tpu_custom_call.1} parent=1 // pred_fallthru
      _
    // Predicated region
    $region46: #{tpu_custom_call.1} parent=1 // pred_check
      _
    $region47: #{tpu_custom_call.1} parent=1 // pred_check_branch
      %296 = sbr.rel (0) target = $region49
    $region48: #{tpu_custom_call.1} parent=1 // pred_region
      %s298 = ssub.s32 256, 256
      %299 = vsyncadd [#allocation5], %s298
      %s300 = sshll.u32 [#allocation9], 4
      %s301 = int_to_ptr.vmem [resolvable:$true] %s300
      %306 = dma.vmem_to_hbm [thread:$0]  %s301, 256, %s5, [#allocation5], 128, 128, 8
    $region49: #{tpu_custom_call.1} parent=1 // pred_fallthru
      _
    // Predicated region
    $region50: #{tpu_custom_call.1} parent=1 // pred_check
      _
    $region51: #{tpu_custom_call.1} parent=1 // pred_check_branch
      %308 = sbr.rel (0) target = $region53
    $region52: #{tpu_custom_call.1} parent=1 // pred_region
      %309 = dma.done [#allocation5], 256
    $region53: #{tpu_custom_call.1} parent=1 // pred_fallthru
      _
    %310 = vsyncpa [#allocation4], 1
    %311 = vsyncpa [#allocation7], 1
    %312 = vsyncpa [#allocation5], 1

</llo_original>
